<compile_context>
chip_gen: v5e
topology: v5e:2x2
jax: 0.10.0
libtpu: 0.0.40
codegen_flags: <defaults>
</compile_context>

<pallas_src>
import jax
import jax.numpy as jnp
from jax import lax
from jax.experimental import pallas as pl
from jax.experimental.pallas import tpu as pltpu

_LANE = 128
_VMEM_BUDGET = 40 * 1024 * 1024   # tile-sizing budget: fits v7x (64 MiB) with headroom
_VMEM_LIMIT = 48 * 1024 * 1024    # scoped-VMEM override (v5e default is only 16 MiB)


def _sigmoid(z):
    # One EUP transcendental (tanh) instead of exp + exact reciprocal.
    return 0.5 * jnp.tanh(0.5 * z) + 0.5


def _logreg_kernel_bt(x_ref, w_ref, b_ref, o_ref):
    """Small-O path, batch on lanes. x:(TB,D) w:(O,D) b:(O,1) o:(O,TB)."""
    z = lax.dot_general(
        w_ref[...], x_ref[...],
        dimension_numbers=(((1,), (1,)), ((), ())),   # contract D with D
        preferred_element_type=jnp.float32,
    )
    o_ref[...] = _sigmoid(z + b_ref[...]).astype(o_ref.dtype)


def _logreg_kernel(x_ref, w_ref, b_ref, o_ref):
    """Large-O path. x:(TB,D) w:(TN,D) b:(1,TN) o:(TB,TN)."""
    z = lax.dot_general(
        x_ref[...], w_ref[...],
        dimension_numbers=(((1,), (1,)), ((), ())),   # contract D with D
        preferred_element_type=jnp.float32,
    )
    o_ref[...] = _sigmoid(z + b_ref[...]).astype(o_ref.dtype)


def _round_up(x, m):
    return ((x + m - 1) // m) * m


def _choose_batch_tile(batch, row_bytes, budget_bytes):
    """Batch tile: multiple of 128 (it is the output lane dim on the small-O
    path), >= 2 grid steps when possible (v7x megacore), capped so the
    double-buffered streams fit the VMEM budget."""
    if batch <= _LANE:
        return batch                                   # single tile, block dims == array dims
    tb = min(1024, _round_up(batch, _LANE))
    tb = min(tb, _round_up(pl.cdiv(batch, 2), _LANE))  # ensure >= 2 parallel steps
    fit = max(_LANE, (budget_bytes // max(row_bytes, 1)) // _LANE * _LANE)
    return max(_LANE, min(tb, fit))


def logistic_regression(x, weight, bias):
    """x: (B, D) f32; weight: (O, D) f32 (torch nn.Linear layout); bias: (O,) f32."""
    B, D = x.shape
    O = weight.shape[0]
    isz = 4  # f32

    if O < _LANE:
        # ------- small-O path: compute transposed, batch on lanes -------
        resident = isz * (O * D + O)                 # single-buffered weight + bias
        row_bytes = 2 * isz * (D + O)                # double-buffered x + out, per batch row
        TB = _choose_batch_tile(B, row_bytes, _VMEM_BUDGET - resident)
        out_t = pl.pallas_call(
            _logreg_kernel_bt,
            out_shape=jax.ShapeDtypeStruct((O, B), jnp.float32),
            grid_spec=pltpu.PrefetchScalarGridSpec(
                num_scalar_prefetch=0,
                grid=(pl.cdiv(B, TB),),
                in_specs=[
                    pl.BlockSpec((TB, D), lambda i: (i, 0)),
                    pl.BlockSpec((O, D), lambda i: (0, 0),
                                 pipeline_mode=pl.Buffered(buffer_count=1)),
                    pl.BlockSpec((O, 1), lambda i: (0, 0),
                                 pipeline_mode=pl.Buffered(buffer_count=1)),
                ],
                out_specs=pl.BlockSpec((O, TB), lambda i: (0, i)),
            ),
            compiler_params=pltpu.CompilerParams(
                dimension_semantics=("parallel",),
                vmem_limit_bytes=_VMEM_LIMIT,
            ),
        )(x, weight, bias.reshape(O, 1))
        # Tiny (O, B) -> (B, O); for O == 1 this is just a reshape (no copy).
        return out_t.reshape(B, O) if O == 1 else out_t.T

    # ------- large-O path: standard (B, O) layout, 2-D parallel grid -------
    # TODO(synk): if 2*TN*D*4 B exceeds the VMEM budget (very large D), add a
    # K-tile grid axis ("arbitrary") with a VMEM accumulator + pl.when finalize.
    TN = min(512, _round_up(O, _LANE))
    fixed = 2 * isz * TN * (D + 1)                   # double-buffered weight + bias tiles
    row_bytes = 2 * isz * (D + TN)                   # double-buffered x + out, per batch row
    TB = _choose_batch_tile(B, row_bytes, _VMEM_BUDGET - fixed)
    out = pl.pallas_call(
        _logreg_kernel,
        out_shape=jax.ShapeDtypeStruct((B, O), jnp.float32),
        grid_spec=pltpu.PrefetchScalarGridSpec(
            num_scalar_prefetch=0,
            grid=(pl.cdiv(B, TB), pl.cdiv(O, TN)),
            in_specs=[
                pl.BlockSpec((TB, D), lambda i, j: (i, 0)),
                pl.BlockSpec((TN, D), lambda i, j: (j, 0)),
                pl.BlockSpec((1, TN), lambda i, j: (0, j)),
            ],
            out_specs=pl.BlockSpec((TB, TN), lambda i, j: (i, j)),
        ),
        compiler_params=pltpu.CompilerParams(
            dimension_semantics=("parallel", "parallel"),
            vmem_limit_bytes=_VMEM_LIMIT,
        ),
    )(x, weight, bias.reshape(1, O))
    return out


if __name__ == "__main__":
    key = jax.random.PRNGKey(0)
    kx, kw, kb = jax.random.split(key, 3)

    batch, input_dim, output_dim = 256, 32, 1

    x = jax.random.normal(kx, (batch, input_dim), dtype=jnp.float32)
    # Deterministic param init mimicking nn.Linear's uniform(-1/sqrt(D), 1/sqrt(D))
    bound = 1.0 / (input_dim ** 0.5)
    weight = jax.random.uniform(kw, (output_dim, input_dim),
                                minval=-bound, maxval=bound, dtype=jnp.float32)
    bias = jax.random.uniform(kb, (output_dim,),
                              minval=-bound, maxval=bound, dtype=jnp.float32)

    run = jax.jit(logistic_regression)
    out = jax.block_until_ready(run(x, weight, bias))
    ref = jax.nn.sigmoid(x @ weight.T + bias)
    assert out.shape == (batch, output_dim)
    assert jnp.allclose(out, ref, atol=1e-5), "mismatch vs reference (small-O path)"

    # Non-multiple-of-8 batch: exercises the Pallas boundary-clipped tile path
    # (no wrapper pad / slice anymore).
    x2 = jax.random.normal(kx, (5, input_dim), dtype=jnp.float32)
    out2 = jax.block_until_ready(logistic_regression(x2, weight, bias))
    ref2 = jax.nn.sigmoid(x2 @ weight.T + bias)
    assert out2.shape == (5, output_dim)
    assert jnp.allclose(out2, ref2, atol=1e-5), "mismatch vs reference (tiny batch)"

    # Wider head: exercises the standard (B, O) layout path.
    O3 = 256
    w3 = jax.random.uniform(kw, (O3, input_dim), minval=-bound, maxval=bound,
                            dtype=jnp.float32)
    b3 = jax.random.uniform(kb, (O3,), minval=-bound, maxval=bound, dtype=jnp.float32)
    out3 = jax.block_until_ready(logistic_regression(x, w3, b3))
    ref3 = jax.nn.sigmoid(x @ w3.T + b3)
    assert out3.shape == (batch, O3)
    assert jnp.allclose(out3, ref3, atol=1e-5), "mismatch vs reference (wide head)"

    print("KERNEL_OK")
</pallas_src>

<mosaic_0001>
module attributes {stable_mosaic.version = 11 : i64} {
  func.func @_logreg_kernel_bt(%arg0: i32, %arg1: memref<128x32xf32, #tpu.memory_space<vmem>>, %arg2: memref<1x32xf32, #tpu.memory_space<vmem>>, %arg3: memref<1x1xf32, #tpu.memory_space<vmem>>, %arg4: memref<1x128xf32, #tpu.memory_space<vmem>>) attributes {dimension_semantics = [#tpu.dimension_semantics<parallel>], iteration_bounds = array<i64: 2>, scalar_prefetch = 0 : i64, scratch_operands = 0 : i64, tpu.core_type = #tpu.core_type<tc>, window_params = [{transform_indices = @transform_0, window_bounds = array<i64: 128, 32>}, {pipeline_mode = #tpu.pipeline_mode<synchronous>, transform_indices = @transform_1, window_bounds = array<i64: 1, 32>}, {pipeline_mode = #tpu.pipeline_mode<synchronous>, transform_indices = @transform_2, window_bounds = array<i64: 1, 1>}, {transform_indices = @transform_3, window_bounds = array<i64: 1, 128>}]} {
    %c0 = arith.constant 0 : index
    %c0_0 = arith.constant 0 : index
    %0 = vector.load %arg2[%c0, %c0_0] : memref<1x32xf32, #tpu.memory_space<vmem>>, vector<1x32xf32>
    %c0_1 = arith.constant 0 : index
    %c0_2 = arith.constant 0 : index
    %1 = vector.load %arg1[%c0_1, %c0_2] : memref<128x32xf32, #tpu.memory_space<vmem>>, vector<128x32xf32>
    %cst = arith.constant dense<0.000000e+00> : vector<1x128xf32>
    %2 = tpu.matmul %0, %1, %cst {dimension_numbers = #tpu.dot_dimension_numbers<[1], [1], [0], [0], [0, 0, 1, 0], [], []>} : vector<1x32xf32>, vector<128x32xf32>, vector<1x128xf32> -> vector<1x128xf32>
    %c0_3 = arith.constant 0 : index
    %c0_4 = arith.constant 0 : index
    %3 = vector.load %arg3[%c0_3, %c0_4] : memref<1x1xf32, #tpu.memory_space<vmem>>, vector<1x1xf32>
    %4 = vector.broadcast %3 : vector<1x1xf32> to vector<1x128xf32>
    %5 = arith.addf %2, %4 : vector<1x128xf32>
    %cst_5 = arith.constant 5.000000e-01 : f32
    %6 = vector.broadcast %cst_5 : f32 to vector<1x128xf32>
    %7 = arith.mulf %6, %5 : vector<1x128xf32>
    %8 = math.tanh %7 : vector<1x128xf32>
    %cst_6 = arith.constant 5.000000e-01 : f32
    %9 = vector.broadcast %cst_6 : f32 to vector<1x128xf32>
    %10 = arith.mulf %9, %8 : vector<1x128xf32>
    %cst_7 = arith.constant 5.000000e-01 : f32
    %11 = vector.broadcast %cst_7 : f32 to vector<1x128xf32>
    %12 = arith.addf %10, %11 : vector<1x128xf32>
    %c0_8 = arith.constant 0 : index
    %c0_9 = arith.constant 0 : index
    %13 = vector.load %arg4[%c0_8, %c0_9] : memref<1x128xf32, #tpu.memory_space<vmem>>, vector<1x128xf32>
    tpu.vector_store %arg4[%c0_8, %c0_9], %12 {strides = array<i32>} : memref<1x128xf32, #tpu.memory_space<vmem>>, vector<1x128xf32>,
    return
  }
  func.func @transform_0(%arg0: i32) -> (i32, i32) {
    %c0_i32 = arith.constant 0 : i32
    %c0_i32_0 = arith.constant 0 : i32
    return %arg0, %c0_i32 : i32, i32
  }
  func.func @transform_1(%arg0: i32) -> (i32, i32) {
    %c0_i32 = arith.constant 0 : i32
    %c0_i32_0 = arith.constant 0 : i32
    %c0_i32_1 = arith.constant 0 : i32
    return %c0_i32, %c0_i32_0 : i32, i32
  }
  func.func @transform_2(%arg0: i32) -> (i32, i32) {
    %c0_i32 = arith.constant 0 : i32
    %c0_i32_0 = arith.constant 0 : i32
    %c0_i32_1 = arith.constant 0 : i32
    return %c0_i32, %c0_i32_0 : i32, i32
  }
  func.func @transform_3(%arg0: i32) -> (i32, i32) {
    %c0_i32 = arith.constant 0 : i32
    %c0_i32_0 = arith.constant 0 : i32
    return %c0_i32, %arg0 : i32, i32
  }
}

</mosaic_0001>

<llo_original>
// kernel: logistic_regression.1
$region0: #{logistic_regression.1}
  #allocation0 [shape = 'u32[]', space=smem, size = 0x4, offset = 0x4, fixed_abs, tag = 'smem constant byte address 0x4 - core index']
  #allocation1 [shape = 'u32[72,128]{1,0:T(1,128)}', space=vmem, size = 0x9000, scoped, tag = 'internal scratch']
  #allocation2 [shape = 'f32[1,1]{1,0:T(1,128)S(1)}', space=vmem, size = 0x200, scoped, tag = 'scoped memory for logistic_regression.1']
  %s0 = inlined_call_operand.vmem [shape: f32[256,32], index: 0, kind: input, shape index: {}]
  %s1 = inlined_call_operand.vmem [shape: f32[1,32], index: 1, kind: input, shape index: {}]
  %s2 = inlined_call_operand.<no memory space> [shape: f32[1,1], index: 2, kind: input, shape index: {}]
  %s3 = inlined_call_operand.hbm [shape: f32[1,256], index: 3, kind: output, shape index: {}]
  %s4 = sld [smem:[#allocation0]]
  $region45: #{logistic_regression.1} parent=0
    _
  %s6 = ssub.s32 1, %s4
  %s7 = scalar_select 0, %s6, %s4
  %v8 = vstv %s2
  %9 = vst [vmem:[#allocation2] sm:$0x1] %v8
  $region1: #{logistic_regression.1} parent=0
    #allocation3 [shape = 'u8[1024]{0}', space=vmem, size = 0x400, scoped, tag = 'output window, operand 0']
    #allocation4 [shape = 's32[2]{0}', space=sflag, size = 0x8, scoped, tag = 'scoped memory for logistic_regression.1']
    %10 = vsyncpa [#allocation4], 0
    %s11 = scalar_lea.sflag [#allocation4], 1
    %12 = vsyncpa %s11, 0
    loop: start=0, step=1, limit=4
    $region2: #{logistic_regression.1} parent=1 // loop_pre_header
      _
    $region3: #{logistic_regression.1} parent=1 // loop_header
      %s14 = sphi 0, %s18
      %p15 = scmp.ge.s32.totalorder %s14, 4
      %s24 = sphi 0, %s26
      %s27 = sphi 0, %s24
      %s28 = sphi 0, %s27
      %s44 = sphi 0, %s28
      %s48 = sphi 0, %s48
      %s50 = sphi 0, %s48
      %s51 = sphi 0, %s50
      %s65 = sphi 0, %s51
      %s69 = sphi 0, %s69
      %s71 = sphi 0, %s69
      %s72 = sphi 0, %s71
      %s86 = sphi 0, %s72
      %s92 = sphi 0, %s94
      %s95 = sphi 0, %s92
      %s96 = sphi 0, %s95
      %s112 = sphi 0, %s96
    $region4: #{logistic_regression.1} parent=1 // loop_header_branch
      %17 = sbr.rel (%p15) target = $region8
    $region5: #{logistic_regression.1} parent=1 // loop_body
      %s19 = ssub.s32 %s14, 1
      %s20 = ssub.s32 %s14, 2
      %s21 = sadd.s32 %s14, 1
      %s22 = ssub.s32 %s14, %s21
      %p23 = scmp.eq.s32.totalorder %s22, 0
      %s25 = sadd.s32 %s24, 1
      %s26 = scalar_select %p23, %s24, %s25
      %p29 = pneg %p23
      %p30 = scmp.eq.s32.totalorder %s14, 1
      %p31 = por %p29, %p30
      %p32 = scmp.ne.s32.totalorder %s24, %s27
      %p33 = scmp.eq.s32.totalorder %s14, 0
      %p34 = por %p32, %p33
      %p35 = scmp.ne.s32.totalorder %s24, %s27
      %p36 = scmp.eq.s32.totalorder %s19, 1
      %p37 = por %p35, %p36
      %p38 = scmp.ne.s32.totalorder %s27, %s28
      %p39 = scmp.eq.s32.totalorder %s19, 0
      %p40 = por %p38, %p39
      %p41 = scmp.ne.s32.totalorder %s27, %s28
      %p42 = scmp.eq.s32.totalorder %s20, 1
      %p43 = por %p41, %p42
      %p45 = scmp.ne.s32.totalorder %s28, %s44
      %p46 = scmp.eq.s32.totalorder %s20, 0
      %p47 = por %p45, %p46
      %s49 = sadd.s32 %s48, 1
      %p52 = scmp.eq.s32.totalorder %s14, 1
      %p53 = scmp.ne.s32.totalorder %s48, %s50
      %p54 = scmp.eq.s32.totalorder %s14, 0
      %p55 = por %p53, %p54
      %p56 = scmp.ne.s32.totalorder %s48, %s50
      %p57 = scmp.eq.s32.totalorder %s19, 1
      %p58 = por %p56, %p57
      %p59 = scmp.ne.s32.totalorder %s50, %s51
      %p60 = scmp.eq.s32.totalorder %s19, 0
      %p61 = por %p59, %p60
      %p62 = scmp.ne.s32.totalorder %s50, %s51
      %p63 = scmp.eq.s32.totalorder %s20, 1
      %p64 = por %p62, %p63
      %p66 = scmp.ne.s32.totalorder %s51, %s65
      %p67 = scmp.eq.s32.totalorder %s20, 0
      %p68 = por %p66, %p67
      %s70 = sadd.s32 %s69, 1
      %p73 = scmp.eq.s32.totalorder %s14, 1
      %p74 = scmp.ne.s32.totalorder %s69, %s71
      %p75 = scmp.eq.s32.totalorder %s14, 0
      %p76 = por %p74, %p75
      %p77 = scmp.ne.s32.totalorder %s69, %s71
      %p78 = scmp.eq.s32.totalorder %s19, 1
      %p79 = por %p77, %p78
      %p80 = scmp.ne.s32.totalorder %s71, %s72
      %p81 = scmp.eq.s32.totalorder %s19, 0
      %p82 = por %p80, %p81
      %p83 = scmp.ne.s32.totalorder %s71, %s72
      %p84 = scmp.eq.s32.totalorder %s20, 1
      %p85 = por %p83, %p84
      %p87 = scmp.ne.s32.totalorder %s72, %s86
      %p88 = scmp.eq.s32.totalorder %s20, 0
      %p89 = por %p87, %p88
      %s90 = ssub.s32 %s14, %s21
      %p91 = scmp.eq.s32.totalorder %s90, 0
      %s93 = sadd.s32 %s92, 1
      %s94 = scalar_select %p91, %s92, %s93
      %p97 = pneg %p91
      %p98 = scmp.eq.s32.totalorder %s14, 1
      %p99 = por %p97, %p98
      %p100 = scmp.ne.s32.totalorder %s92, %s95
      %p101 = scmp.eq.s32.totalorder %s14, 0
      %p102 = por %p100, %p101
      %p103 = scmp.ne.s32.totalorder %s92, %s95
      %p104 = scmp.eq.s32.totalorder %s19, 1
      %p105 = por %p103, %p104
      %p106 = scmp.ne.s32.totalorder %s95, %s96
      %p107 = scmp.eq.s32.totalorder %s19, 0
      %p108 = por %p106, %p107
      %p109 = scmp.ne.s32.totalorder %s95, %s96
      %p110 = scmp.eq.s32.totalorder %s20, 1
      %p111 = por %p109, %p110
      %p113 = scmp.ne.s32.totalorder %s96, %s112
      %p114 = scmp.eq.s32.totalorder %s20, 0
      %p115 = por %p113, %p114
      %p116 = scmp.le.s32.totalorder 1, %s14
      %p117 = scmp.lt.s32.totalorder %s14, 3
      %p118 = pnand %p116, %p117
      %p119 = pneg %p118
      // Predicated region
      $region9: #{logistic_regression.1} parent=5 // pred_check
        _
      $region10: #{logistic_regression.1} parent=5 // pred_check_branch
        %121 = sbr.rel (%p118) target = $region12
      $region11: #{logistic_regression.1} parent=5 // pred_region
        %s122 = ssub.s32 %s14, 1
        // Predicated region
        $region13: #{logistic_regression.1} parent=11 // pred_check
          %p123 = pneg %p61
        $region14: #{logistic_regression.1} parent=11 // pred_check_branch
          %125 = sbr.rel (%p123) target = $region16
        $region15: #{logistic_regression.1} parent=11 // pred_region
          _
        $region16: #{logistic_regression.1} parent=11 // pred_fallthru
          _
        // Predicated region
        $region17: #{logistic_regression.1} parent=11 // pred_check
          %p126 = pneg %p82
        $region18: #{logistic_regression.1} parent=11 // pred_check_branch
          %128 = sbr.rel (%p126) target = $region20
        $region19: #{logistic_regression.1} parent=11 // pred_region
          _
        $region20: #{logistic_regression.1} parent=11 // pred_fallthru
          _
      $region12: #{logistic_regression.1} parent=5 // pred_fallthru
        _
      %p129 = scmp.lt.s32.totalorder %s14, 2
      // Predicated region
      $region21: #{logistic_regression.1} parent=5 // pred_check
        %p130 = pneg %p129
      $region22: #{logistic_regression.1} parent=5 // pred_check_branch
        %132 = sbr.rel (%p130) target = $region24
      $region23: #{logistic_regression.1} parent=5 // pred_region
        // Predicated region
        $region25: #{logistic_regression.1} parent=23 // pred_check
          %p133 = pneg %p34
        $region26: #{logistic_regression.1} parent=23 // pred_check_branch
          %135 = sbr.rel (%p133) target = $region28
        $region27: #{logistic_regression.1} parent=23 // pred_region
          %s136 = smul.u32 16, %s14
          %p137 = scmp.lt.s32.totalorder %s136, 31
          %s138 = scalar_select %p137, %s136, 31
          %s139 = smul.addr %s138, 8
          %s140 = scalar_lea.vmem %s0, %s139
          %s141 = smul.u32 16, %s14
        $region28: #{logistic_regression.1} parent=23 // pred_fallthru
          _
      $region24: #{logistic_regression.1} parent=5 // pred_fallthru
        _
      %p142 = scmp.le.s32.totalorder 1, %s14
      %p143 = scmp.lt.s32.totalorder %s14, 3
      %p144 = pnand %p142, %p143
      %p145 = pneg %p144
      // Predicated region
      $region29: #{logistic_regression.1} parent=5 // pred_check
        _
      $region30: #{logistic_regression.1} parent=5 // pred_check_branch
        %147 = sbr.rel (%p144) target = $region32
      $region31: #{logistic_regression.1} parent=5 // pred_region
        %s148 = ssub.s32 %s14, 1
        %s149 = smul.u32 16, %s19
        %p150 = scmp.lt.s32.totalorder %s149, 31
        %s151 = scalar_select %p150, %s149, 31
        %s152 = smul.addr %s151, 8
        %s153 = scalar_lea.vmem %s0, %s152
        %p154 = pneg %p40
        %p155 = pneg %p37
        %p156 = pneg %p61
        %p157 = pneg %p58
        %p158 = pneg %p82
        %p159 = pneg %p79
        %p160 = pneg %p108
        %p161 = pneg %p105
        %s162 = sand.u32 %s95, 1
        %s163 = scalar_lea.sflag [#allocation4], %s162
        %s164 = sand.u32 %s95, 1
        %s165 = scalar_lea.vmem [#allocation3], %s164
        %s166 = smul.u32 16, %s19
        %p167 = scmp.lt.s32.totalorder %s166, 31
        %s168 = scalar_select %p167, %s166, 31
        %s169 = smul.addr %s168, 8
        %s170 = scalar_lea.vmem %s0, %s169
        %s171 = smul.u32 16, %s19
        %v172 = vld [vmem:[%s1] sm:$0x1]
        %v173 = vld [vmem:[%s170] sm:$0xff]
        %v174 = vld [vmem:[%s170 + $0x8] sm:$0xff]
        %v175 = vld [vmem:[%s170 + $0x10] sm:$0xff]
        %v176 = vld [vmem:[%s170 + $0x18] sm:$0xff]
        %v177 = vld [vmem:[%s170 + $0x20] sm:$0xff]
        %v178 = vld [vmem:[%s170 + $0x28] sm:$0xff]
        %v179 = vld [vmem:[%s170 + $0x30] sm:$0xff]
        %v180 = vld [vmem:[%s170 + $0x38] sm:$0xff]
        %v181 = vld [vmem:[%s170 + $0x40] sm:$0xff]
        %v182 = vld [vmem:[%s170 + $0x48] sm:$0xff]
        %v183 = vld [vmem:[%s170 + $0x50] sm:$0xff]
        %v184 = vld [vmem:[%s170 + $0x58] sm:$0xff]
        %v185 = vld [vmem:[%s170 + $0x60] sm:$0xff]
        %v186 = vld [vmem:[%s170 + $0x68] sm:$0xff]
        %v187 = vld [vmem:[%s170 + $0x70] sm:$0xff]
        %v188 = vld [vmem:[%s170 + $0x78] sm:$0xff]
        %v189 = vld [vmem:[#allocation2] sm:$0x1]
        %191 = vset.pattern.permute.xlu0 0
        %192 = vperm.xlu0 %191, %v189
        %v193 = vpop.permute.xlu0 %192
        %v195 = vperm.slane %v193, 0
        %vm196 = vcmask 261120
        %v198 = vsel %vm196, %v172, 0
        %v201 = vsel %vm196, %v173, 0
        %v204 = vsel %vm196, %v174, 0
        %v207 = vsel %vm196, %v175, 0
        %v210 = vsel %vm196, %v176, 0
        %v213 = vsel %vm196, %v177, 0
        %v216 = vsel %vm196, %v178, 0
        %v219 = vsel %vm196, %v179, 0
        %v222 = vsel %vm196, %v180, 0
        %v225 = vsel %vm196, %v181, 0
        %v228 = vsel %vm196, %v182, 0
        %v231 = vsel %vm196, %v183, 0
        %v234 = vsel %vm196, %v184, 0
        %v237 = vsel %vm196, %v185, 0
        %v240 = vsel %vm196, %v186, 0
        %v243 = vsel %vm196, %v187, 0
        %v246 = vsel %vm196, %v188, 0
        %248 = vmatpush.xpose.msra.mxu0 %v246
        %249 = vmatpush.xpose.msra.mxu0 %v243
        %250 = vmatpush.xpose.msra.mxu0 %v240
        %251 = vmatpush.xpose.msra.mxu0 %v237
        %252 = vmatpush.xpose.msra.mxu0 %v234
        %253 = vmatpush.xpose.msra.mxu0 %v231
        %254 = vmatpush.xpose.msra.mxu0 %v228
        %255 = vmatpush.xpose.msra.mxu0 %v225
        %256 = vmatpush.xpose.msra.mxu0 %v222
        %257 = vmatpush.xpose.msra.mxu0 %v219
        %258 = vmatpush.xpose.msra.mxu0 %v216
        %259 = vmatpush.xpose.msra.mxu0 %v213
        %260 = vmatpush.xpose.msra.mxu0 %v210
        %261 = vmatpush.xpose.msra.mxu0 %v207
        %262 = vmatpush.xpose.msra.mxu0 %v204
        %263 = vmatpush.xpose.msra.mxu0 %v201
        %264 = vmatmul.f32.gmra.mxu0 %v198
        %v265 = vpop.f32.mrf.mxu0
        %v266 = vadd.f32 %v195, %v265
        %267 = vdwg.mxu0
        %v268 = vmul.f32 %v266, 0.5
        %v269 = vtanh.pop %v268
        %v270 = vmul.f32 %v269, 0.5
        %v271 = vadd.f32 %v270, 0.5
        %272 = vst [vmem:[%s165] sm:$0x1] %v271
        %s273 = sand.u32 %s95, 1
        %s274 = scalar_lea.sflag [#allocation4], %s273
        %s275 = sand.u32 %s95, 1
        %s276 = scalar_lea.vmem [#allocation3], %s275
        // Predicated region
        $region33: #{logistic_regression.1} parent=31 // pred_check
          %p277 = pneg %p105
        $region34: #{logistic_regression.1} parent=31 // pred_check_branch
          %279 = sbr.rel (%p277) target = $region36
        $region35: #{logistic_regression.1} parent=31 // pred_region
          %281 = vsyncadd %s274, 0
          %s282 = scalar_lea.hbm %s3, %s19
          %s284 = sshll.u32 %s276, 4
          %s285 = int_to_ptr.vmem [resolvable:$true] %s284
          %s286 = sshll.u32 %s282, 4
          %s287 = int_to_ptr.hbm [resolvable:$true] %s286
          %289 = dma.vmem_to_hbm [thread:$0]  %s285, 16, %s287, %s274
        $region36: #{logistic_regression.1} parent=31 // pred_fallthru
          _
      $region32: #{logistic_regression.1} parent=5 // pred_fallthru
        _
      %p290 = scmp.le.s32.totalorder 2, %s14
      // Predicated region
      $region37: #{logistic_regression.1} parent=5 // pred_check
        %p291 = pneg %p290
      $region38: #{logistic_regression.1} parent=5 // pred_check_branch
        %293 = sbr.rel (%p291) target = $region40
      $region39: #{logistic_regression.1} parent=5 // pred_region
        %s294 = ssub.s32 %s14, 2
        // Predicated region
        $region41: #{logistic_regression.1} parent=39 // pred_check
          %p295 = pneg %p111
        $region42: #{logistic_regression.1} parent=39 // pred_check_branch
          %297 = sbr.rel (%p295) target = $region44
        $region43: #{logistic_regression.1} parent=39 // pred_region
          %s298 = sand.u32 %s96, 1
          %s299 = scalar_lea.sflag [#allocation4], %s298
          %s300 = sand.u32 %s96, 1
          %s301 = scalar_lea.vmem [#allocation3], %s300
          %303 = dma.done %s299, 16
        $region44: #{logistic_regression.1} parent=39 // pred_fallthru
          _
      $region40: #{logistic_regression.1} parent=5 // pred_fallthru
        _
    $region6: #{logistic_regression.1} parent=1 // loop_footer
      %s18 = sadd.s32 1, %s14
    $region7: #{logistic_regression.1} parent=1 // loop_footer_branch
      %13 = sbr.rel target = $region3
    $region8: #{logistic_regression.1} parent=1 // loop_exit
      _
    %304 = vsyncpa [#allocation4], 1
    %s305 = scalar_lea.sflag [#allocation4], 1
    %306 = vsyncpa %s305, 1

</llo_original>
